<compile_context>
chip_gen: v7x
topology: tpu7x:2x2x1
jax: 0.10.0
libtpu: 0.0.40
codegen_flags: <defaults>
</compile_context>

<pallas_src>
import functools

import jax
import jax.numpy as jnp
from jax.experimental import pallas as pl
from jax.experimental.pallas import tpu as pltpu


def _fu_kernel(u_ref, na_ref, w_ref, out_ref):
    # u_ref  : (tb, nx+1)  full-width U rows; column 0 = external potential
    # na_ref : (tb, nx)    node_attr tile
    # w_ref  : (2, nx)     row 0 = ext_linear, row 1 = int_linear (grid-resident)
    # out_ref: (tb, nx)
    u = u_ref[...]
    u_exp = u[:, 0:1]            # (tb, 1)  broadcasts over lanes
    u_inp = u[:, 1:]             # (tb, nx) 1-lane in-register shift (cheap here)
    na = na_ref[...]
    w = w_ref[...]
    ext_w = w[0:1, :]            # (1, nx) broadcasts over sublanes
    int_w = w[1:2, :]            # (1, nx)
    out_ref[...] = (u_exp - na) * ext_w + (u_inp - na) * int_w


def _round_up(x, m):
    return ((x + m - 1) // m) * m


def _choose_batch_tile(B, nx, itemsize=4, block_budget=4 << 20):
    """Pick the batch (sublane) tile.

    Target: ~4 MiB per-stream blocks (3 streams x 2 buffers ~ 24 MiB, safe on
    v7x's 64 MiB VMEM and within the raised scoped limit everywhere), while
    still giving the pipeline / both v7x TensorCores several grid steps when
    B is large.
    """
    cap = max(((block_budget // (max(nx, 1) * itemsize)) // 8) * 8, 8)
    if B <= cap:
        if B >= 128:
            # Split into ~8 blocks so megacore + double-buffering have work.
            return min(cap, max(_round_up(pl.cdiv(B, 8), 8), 8))
        return B                   # full batch in one block (full-dim rule)
    return cap


def _fu_reference(node_attr, U, ext_linear, int_linear):
    """Pure-JAX reference (mirrors the PyTorch broadcasting)."""
    u_exp, u_inp = U[:, :1], U[:, 1:]
    return ((u_exp[:, :, None] - node_attr) * ext_linear
            + (u_inp[:, :, None] - node_attr) * int_linear)


@functools.partial(jax.jit, static_argnames=("force_pallas",))
def fu_forward(node_attr, U, ext_linear, int_linear, *, force_pallas=False):
    """node_attr: (B, nx, 1); U: (B, nx+1); params: (1, nx, 1). Returns (B, nx, 1)."""
    B, nx, _ = node_attr.shape
    assert U.shape == (B, nx + 1)

    # Tiny problems are pure launch/DMA overhead for a custom call; let XLA
    # fuse them instead (the demo below forces the Pallas path to test it).
    if not force_pallas and B * nx < (1 << 20):
        return _fu_reference(node_attr, U, ext_linear, int_linear)

    # Full-width (no nx tiling) blocking keeps the +1 lane shift in-kernel.
    # If nx is so large that even an 8-row block blows the budget, fall back.
    if 6 * 8 * (nx + 1) * 4 > (40 << 20):
        # TODO(synk): nx-tiled Pallas path for extremely wide networks.
        return _fu_reference(node_attr, U, ext_linear, int_linear)

    tb = _choose_batch_tile(B, nx)

    na2d = node_attr[..., 0]                                    # (B, nx) free squeeze
    # Stack both parameter vectors -> one small (2, nx) grid-resident stream.
    w = jnp.concatenate([ext_linear[..., 0], int_linear[..., 0]], axis=0)

    grid = (pl.cdiv(B, tb),)
    bytes_accessed = 4 * (B * (nx + 1) + 2 * B * nx + 2 * nx)   # U + na + out + w

    out2d = pl.pallas_call(
        _fu_kernel,
        out_shape=jax.ShapeDtypeStruct((B, nx), node_attr.dtype),
        grid=grid,
        in_specs=[
            pl.BlockSpec((tb, nx + 1), lambda i: (i, 0)),   # U: whole rows, no copy
            pl.BlockSpec((tb, nx), lambda i: (i, 0)),       # node_attr
            pl.BlockSpec((2, nx), lambda i: (0, 0)),        # params: grid-resident
        ],
        out_specs=pl.BlockSpec((tb, nx), lambda i: (i, 0)),
        compiler_params=pltpu.CompilerParams(
            dimension_semantics=("parallel",),
            vmem_limit_bytes=48 << 20),
        cost_estimate=pl.CostEstimate(
            flops=5 * B * nx,
            transcendentals=0,
            bytes_accessed=bytes_accessed),
    )(U, na2d, w)

    return out2d[..., None]                                     # (B, nx, 1)


if __name__ == "__main__":
    key = jax.random.PRNGKey(0)
    k1, k2, k3, k4 = jax.random.split(key, 4)

    B = 2
    nx = 32

    # Deterministic parameter init matching torch uniform_(0.001, 0.01)
    ext_linear = jax.random.uniform(
        k1, (1, nx, 1), minval=0.001, maxval=0.01, dtype=jnp.float32)
    int_linear = jax.random.uniform(
        k2, (1, nx, 1), minval=0.001, maxval=0.01, dtype=jnp.float32)

    # Inputs
    node_attr = jax.random.normal(k3, (B, nx, 1), dtype=jnp.float32)
    U = jax.random.normal(k4, (B, nx + 1), dtype=jnp.float32)

    # Force the Pallas path so the kernel is actually compiled and executed
    # even at this demo scale.
    out = fu_forward(node_attr, U, ext_linear, int_linear, force_pallas=True)
    out = jax.block_until_ready(out)

    ref = _fu_reference(node_attr, U, ext_linear, int_linear)
    assert out.shape == (B, nx, 1)
    assert jnp.allclose(out, ref, atol=1e-6, rtol=1e-6)

    print("KERNEL_OK")
</pallas_src>

<mosaic_0001>
module attributes {stable_mosaic.version = 11 : i64} {
  func.func @_fu_kernel(%arg0: i32, %arg1: memref<2x33xf32, #tpu.memory_space<vmem>>, %arg2: memref<2x32xf32, #tpu.memory_space<vmem>>, %arg3: memref<2x32xf32, #tpu.memory_space<vmem>>, %arg4: memref<2x32xf32, #tpu.memory_space<vmem>>) attributes {dimension_semantics = [#tpu.dimension_semantics<parallel>], iteration_bounds = array<i64: 1>, scalar_prefetch = 0 : i64, scratch_operands = 0 : i64, tpu.core_type = #tpu.core_type<tc>, window_params = [{transform_indices = @transform_0, window_bounds = array<i64: 2, 33>}, {transform_indices = @transform_1, window_bounds = array<i64: 2, 32>}, {pipeline_mode = #tpu.pipeline_mode<synchronous>, transform_indices = @transform_2, window_bounds = array<i64: 2, 32>}, {transform_indices = @transform_3, window_bounds = array<i64: 2, 32>}]} {
    %c0 = arith.constant 0 : index
    %c0_0 = arith.constant 0 : index
    %0 = vector.load %arg1[%c0, %c0_0] : memref<2x33xf32, #tpu.memory_space<vmem>>, vector<2x33xf32>
    %1 = vector.extract_strided_slice %0 {offsets = [0, 0], sizes = [2, 1], strides = [1, 1]} : vector<2x33xf32> to vector<2x1xf32>
    %2 = vector.extract_strided_slice %0 {offsets = [0, 1], sizes = [2, 32], strides = [1, 1]} : vector<2x33xf32> to vector<2x32xf32>
    %c0_1 = arith.constant 0 : index
    %c0_2 = arith.constant 0 : index
    %3 = vector.load %arg2[%c0_1, %c0_2] : memref<2x32xf32, #tpu.memory_space<vmem>>, vector<2x32xf32>
    %c0_3 = arith.constant 0 : index
    %c0_4 = arith.constant 0 : index
    %4 = vector.load %arg3[%c0_3, %c0_4] : memref<2x32xf32, #tpu.memory_space<vmem>>, vector<2x32xf32>
    %5 = vector.extract_strided_slice %4 {offsets = [0, 0], sizes = [1, 32], strides = [1, 1]} : vector<2x32xf32> to vector<1x32xf32>
    %6 = vector.extract_strided_slice %4 {offsets = [1, 0], sizes = [1, 32], strides = [1, 1]} : vector<2x32xf32> to vector<1x32xf32>
    %7 = vector.broadcast %1 : vector<2x1xf32> to vector<2x32xf32>
    %8 = arith.subf %7, %3 : vector<2x32xf32>
    %9 = vector.broadcast %5 : vector<1x32xf32> to vector<2x32xf32>
    %10 = arith.mulf %8, %9 : vector<2x32xf32>
    %11 = arith.subf %2, %3 : vector<2x32xf32>
    %12 = vector.broadcast %6 : vector<1x32xf32> to vector<2x32xf32>
    %13 = arith.mulf %11, %12 : vector<2x32xf32>
    %14 = arith.addf %10, %13 : vector<2x32xf32>
    %c0_5 = arith.constant 0 : index
    %c0_6 = arith.constant 0 : index
    %15 = vector.load %arg4[%c0_5, %c0_6] : memref<2x32xf32, #tpu.memory_space<vmem>>, vector<2x32xf32>
    tpu.vector_store %arg4[%c0_5, %c0_6], %14 {strides = array<i32>} : memref<2x32xf32, #tpu.memory_space<vmem>>, vector<2x32xf32>,
    return
  }
  func.func @transform_0(%arg0: i32) -> (i32, i32) {
    %c0_i32 = arith.constant 0 : i32
    %c0_i32_0 = arith.constant 0 : i32
    return %arg0, %c0_i32 : i32, i32
  }
  func.func @transform_1(%arg0: i32) -> (i32, i32) {
    %c0_i32 = arith.constant 0 : i32
    %c0_i32_0 = arith.constant 0 : i32
    return %arg0, %c0_i32 : i32, i32
  }
  func.func @transform_2(%arg0: i32) -> (i32, i32) {
    %c0_i32 = arith.constant 0 : i32
    %c0_i32_0 = arith.constant 0 : i32
    %c0_i32_1 = arith.constant 0 : i32
    return %c0_i32, %c0_i32_0 : i32, i32
  }
  func.func @transform_3(%arg0: i32) -> (i32, i32) {
    %c0_i32 = arith.constant 0 : i32
    %c0_i32_0 = arith.constant 0 : i32
    return %arg0, %c0_i32 : i32, i32
  }
}

</mosaic_0001>

<llo_original>
// kernel: fu_forward.1
$region0: #{fu_forward.1}
  #allocation0 [shape = 'u32[]', space=smem, size = 0x4, offset = 0x4, fixed_abs, tag = 'smem constant byte address 0x4 - core index']
  #allocation1 [shape = 'u32[144,128]{1,0:T(1,128)}', space=vmem, size = 0x12000, scoped, tag = 'internal scratch']
  %s0 = inlined_call_operand.vmem [shape: f32[2,33], index: 0, kind: input, shape index: {}]
  %s1 = inlined_call_operand.vmem [shape: f32[2,32], index: 1, kind: input, shape index: {}]
  %s2 = inlined_call_operand.vmem [shape: f32[2,32], index: 2, kind: input, shape index: {}]
  %s3 = inlined_call_operand.hbm [shape: f32[2,32], index: 3, kind: output, shape index: {}]
  %s4 = sld [smem:[#allocation0]]
  $region22: #{fu_forward.1} parent=0
    _
  %s6 = ssub.s32 1, %s4
  %s7 = scalar_select 0, %s6, %s4
  $region1: #{fu_forward.1} parent=0
    #allocation2 [shape = 'u8[1024]{0}', space=vmem, size = 0x400, scoped, tag = 'output window, operand 0, single buffered']
    #allocation3 [shape = 's32[1]{0}', space=sflag, size = 0x4, scoped, tag = 'scoped memory for fu_forward.1']
    %8 = vsyncpa [#allocation3], 0
    // Predicated region
    $region2: #{fu_forward.1} parent=1 // pred_check
      _
    $region3: #{fu_forward.1} parent=1 // pred_check_branch
      %10 = sbr.rel (0) target = $region5
    $region4: #{fu_forward.1} parent=1 // pred_region
      _
    $region5: #{fu_forward.1} parent=1 // pred_fallthru
      _
    // Predicated region
    $region6: #{fu_forward.1} parent=1 // pred_check
      _
    $region7: #{fu_forward.1} parent=1 // pred_check_branch
      %12 = sbr.rel (0) target = $region9
    $region8: #{fu_forward.1} parent=1 // pred_region
      _
    $region9: #{fu_forward.1} parent=1 // pred_fallthru
      _
    // Predicated region
    $region10: #{fu_forward.1} parent=1 // pred_check
      _
    $region11: #{fu_forward.1} parent=1 // pred_check_branch
      %14 = sbr.rel (0) target = $region13
    $region12: #{fu_forward.1} parent=1 // pred_region
      _
    $region13: #{fu_forward.1} parent=1 // pred_fallthru
      _
    %v15 = vld [vmem:[%s0] sm:$0x3]
    %v16 = vld [vmem:[%s1] sm:$0x3]
    %v17 = vld [vmem:[%s2] sm:$0x3]
    %19 = vset.pattern.permute.xlu0 0
    %20 = vperm.xlu0 %19, %v15
    %v21 = vpop.permute.xlu0 %20
    %v23 = vsub.f32 %v21, %v16
    %v24 = vlaneseq
    %v25 = vshrl.u32 %v24, 7
    %v26 = vsub.s32 0, %v25
    %v27 = vrot.slane %v17, %v26
    %v28 = vmul.f32 %v23, %v27
    %30 = vrot.lane.b32.xlu0 %v16, 1
    %v31 = vpop.permute.xlu0 %30
    %v33 = vsub.f32 %v15, %v31
    %v34 = vlaneseq
    %v35 = vshrl.u32 %v34, 7
    %v36 = vsub.s32 1, %v35
    %v37 = vrot.slane %v17, %v36
    %39 = vrot.lane.b32.xlu0 %v37, 1
    %v40 = vpop.permute.xlu0 %39
    %v42 = vmul.f32 %v33, %v40
    %44 = vrot.lane.b32.xlu0 %v42, 127
    %v45 = vpop.permute.xlu0 %44
    %v47 = vadd.f32 %v28, %v45
    %vm48 = vcmask 254976
    %49 = vst.msk [vmem:[#allocation2] sm:$0x3] %vm48, %v47
    // Predicated region
    $region14: #{fu_forward.1} parent=1 // pred_check
      _
    $region15: #{fu_forward.1} parent=1 // pred_check_branch
      %51 = sbr.rel (0) target = $region17
    $region16: #{fu_forward.1} parent=1 // pred_region
      %s53 = ssub.s32 32, 32
      %54 = vsyncadd [#allocation3], %s53
      %s56 = sshll.u32 [#allocation2], 4
      %s57 = int_to_ptr.vmem [resolvable:$true] %s56
      %59 = dma.vmem_to_hbm [thread:$0]  %s57, 32, %s3, [#allocation3]
    $region17: #{fu_forward.1} parent=1 // pred_fallthru
      _
    // Predicated region
    $region18: #{fu_forward.1} parent=1 // pred_check
      _
    $region19: #{fu_forward.1} parent=1 // pred_check_branch
      %61 = sbr.rel (0) target = $region21
    $region20: #{fu_forward.1} parent=1 // pred_region
      %62 = dma.done [#allocation3], 32
    $region21: #{fu_forward.1} parent=1 // pred_fallthru
      _
    %63 = vsyncpa [#allocation3], 1

</llo_original>
